<compile_context>
chip_gen: v5e
topology: v5e:2x2
jax: 0.10.0
libtpu: 0.0.40
codegen_flags: <defaults>
</compile_context>

<pallas_src>
import jax
import jax.numpy as jnp
from jax.experimental import pallas as pl
from jax.experimental.pallas import tpu as pltpu

_H = 15    # fc1 / fc2 hidden width
_HP = 16   # padded per-branch width so the two branches occupy disjoint columns


def _round_up(x, m):
    return (x + m - 1) // m * m


def lnet_kernel(x_ref, w1_ref, p_ref, out_ref):
    """One batch tile.

    x_ref  : (TB, 2*D)    interleaved features, x[b, 2*d + s] == inp[b, d, s]
    w1_ref : (2*D, 2*_HP) interleaved fc1 weight (branch0 cols 0..14,
                          branch1 cols 16..30, zeros elsewhere)
    p_ref  : (4, 2*_HP)   row0 = packed b1, row1/row2 = masked fc2 weight rows,
                          row3[:4] = [b2, w3_0, w3_1, b3]
    out_ref: (TB, 1)
    """
    p = p_ref[...]
    b1p = p[0:1, :]          # (1, 32) fc1 bias (both branches)
    w2a = p[1:2, :]          # (1, 32) fc2 weights masked to branch-0 columns
    w2b = p[2:3, :]          # (1, 32) fc2 weights masked to branch-1 columns
    b2 = p[3:4, 0:1]
    w3a = p[3:4, 1:2]
    w3b = p[3:4, 2:3]
    b3 = p[3:4, 3:4]

    # fc1 for BOTH branches in one MXU matmul, then bias + relu (VPU).
    h = jnp.dot(x_ref[...], w1_ref[...], preferred_element_type=jnp.float32)
    h = jnp.maximum(h + b1p, 0.0)                                  # (TB, 32)

    # fc2 (15 -> 1) per branch: VPU multiply + XLU lane reduction.
    y0 = jnp.maximum(jnp.sum(h * w2a, axis=-1, keepdims=True) + b2, 0.0)
    y1 = jnp.maximum(jnp.sum(h * w2b, axis=-1, keepdims=True) + b2, 0.0)

    # fc3 over concat([y0, y1], -1) == scalar-weighted sum.
    out_ref[...] = y0 * w3a + y1 * w3b + b3


def init_params(key, input_size):
    """Raw params with PyTorch nn.Linear-style uniform init."""
    ks = jax.random.split(key, 6)

    def uni(k, shape, fan_in):
        bound = 1.0 / jnp.sqrt(jnp.float32(fan_in))
        return jax.random.uniform(k, shape, jnp.float32, -bound, bound)

    w1 = uni(ks[0], (_H, input_size), input_size)    # fc1.weight
    b1 = uni(ks[1], (_H,), input_size)               # fc1.bias
    w2 = uni(ks[2], (1, _H), _H)                     # fc2.weight
    b2 = uni(ks[3], (1,), _H)                        # fc2.bias
    w3 = uni(ks[4], (1, 2), 2)                       # fc3.weight
    b3 = uni(ks[5], (1,), 2)                         # fc3.bias
    return (w1, b1, w2, b2, w3, b3)


def pack_params(params):
    """One-time (init-time) weight prep so the forward path has no per-call
    transposes/reshapes of the parameters."""
    w1, b1, w2, b2, w3, b3 = params
    H, D = w1.shape
    assert H == _H

    # Interleaved + zero-padded fc1 weight matching x2d[b, 2*d + s].
    w1i = jnp.zeros((2 * D, 2 * _HP), jnp.float32)
    w1i = w1i.at[0::2, 0:_H].set(w1.T)            # branch 0 (s == 0)
    w1i = w1i.at[1::2, _HP:_HP + _H].set(w1.T)    # branch 1 (s == 1)

    b1p = jnp.zeros((2 * _HP,), jnp.float32)
    b1p = b1p.at[0:_H].set(b1).at[_HP:_HP + _H].set(b1)
    w2a = jnp.zeros((2 * _HP,), jnp.float32).at[0:_H].set(w2[0])
    w2b = jnp.zeros((2 * _HP,), jnp.float32).at[_HP:_HP + _H].set(w2[0])
    scal = jnp.zeros((2 * _HP,), jnp.float32)
    scal = scal.at[0].set(b2[0]).at[1].set(w3[0, 0]) \
               .at[2].set(w3[0, 1]).at[3].set(b3[0])

    p = jnp.stack([b1p, w2a, w2b, scal], axis=0)   # (4, 32)
    return (w1i, p)


def lnet_forward(inp, packed_params, *, tile_b=512):
    """inp: (B, D, 2) float32. Matches torch.squeeze(LNet(inp))."""
    w1i, p = packed_params
    B, D, two = inp.shape
    assert two == 2 and w1i.shape[0] == 2 * D

    # Free, contiguous reinterpretation (no strided slices, no extra HBM pass).
    x2d = inp.reshape(B, 2 * D)

    tb = min(tile_b, _round_up(B, 8))
    b_pad = _round_up(B, tb)
    if b_pad != B:
        x2d = jnp.pad(x2d, ((0, b_pad - B), (0, 0)))

    out = pl.pallas_call(
        lnet_kernel,
        out_shape=jax.ShapeDtypeStruct((b_pad, 1), jnp.float32),
        grid=(b_pad // tb,),
        in_specs=[
            pl.BlockSpec((tb, 2 * D), lambda i: (i, 0)),          # batch tile
            pl.BlockSpec((2 * D, 2 * _HP), lambda i: (0, 0)),     # resident w1
            pl.BlockSpec((4, 2 * _HP), lambda i: (0, 0)),         # resident params
        ],
        out_specs=pl.BlockSpec((tb, 1), lambda i: (i, 0)),
        compiler_params=pltpu.CompilerParams(
            dimension_semantics=("parallel",)),   # megacore / v7x 2-TC sharding
    )(x2d, w1i, p)

    # torch.squeeze semantics: (B,) for B > 1, scalar for B == 1.
    return jnp.squeeze(out[:B])


def lnet_reference(inp, params):
    """Pure-JAX reference mirroring the PyTorch forward."""
    w1, b1, w2, b2, w3, b3 = params

    def branch(x):
        h = jnp.maximum(x @ w1.T + b1, 0.0)
        return jnp.maximum(h @ w2.T + b2, 0.0)

    y1 = branch(inp[:, :, 0])
    y2 = branch(inp[:, :, 1])
    y3 = jnp.concatenate([y1, y2], axis=-1) @ w3.T + b3
    return jnp.squeeze(y3)


if __name__ == "__main__":
    B, D = 256, 32                                   # small demo: batch, input_size
    key = jax.random.PRNGKey(0)
    k_x, k_p = jax.random.split(key)
    inp = jax.random.normal(k_x, (B, D, 2), dtype=jnp.float32)

    params = init_params(k_p, D)
    packed = pack_params(params)                     # one-time weight prep

    # tile_b=128 -> 2 batch tiles so the pipelined grid path is exercised.
    fwd = jax.jit(lambda x, pk: lnet_forward(x, pk, tile_b=128))
    out = jax.block_until_ready(fwd(inp, packed))
    ref = jax.block_until_ready(lnet_reference(inp, params))

    assert out.shape == (B,), out.shape
    assert jnp.allclose(out, ref, atol=1e-4, rtol=1e-4), (
        float(jnp.max(jnp.abs(out - ref))))
    print("KERNEL_OK")
</pallas_src>

<mosaic_0001>
module attributes {stable_mosaic.version = 11 : i64} {
  func.func @lnet_kernel(%arg0: i32, %arg1: memref<128x64xf32, #tpu.memory_space<vmem>>, %arg2: memref<64x32xf32, #tpu.memory_space<vmem>>, %arg3: memref<4x32xf32, #tpu.memory_space<vmem>>, %arg4: memref<128x1xf32, #tpu.memory_space<vmem>>) attributes {dimension_semantics = [#tpu.dimension_semantics<parallel>], iteration_bounds = array<i64: 2>, scalar_prefetch = 0 : i64, scratch_operands = 0 : i64, tpu.core_type = #tpu.core_type<tc>, window_params = [{transform_indices = @transform_0, window_bounds = array<i64: 128, 64>}, {pipeline_mode = #tpu.pipeline_mode<synchronous>, transform_indices = @transform_1, window_bounds = array<i64: 64, 32>}, {pipeline_mode = #tpu.pipeline_mode<synchronous>, transform_indices = @transform_2, window_bounds = array<i64: 4, 32>}, {transform_indices = @transform_3, window_bounds = array<i64: 128, 1>}]} {
    %c0 = arith.constant 0 : index
    %c0_0 = arith.constant 0 : index
    %0 = vector.load %arg3[%c0, %c0_0] : memref<4x32xf32, #tpu.memory_space<vmem>>, vector<4x32xf32>
    %1 = vector.extract_strided_slice %0 {offsets = [0, 0], sizes = [1, 32], strides = [1, 1]} : vector<4x32xf32> to vector<1x32xf32>
    %2 = vector.extract_strided_slice %0 {offsets = [1, 0], sizes = [1, 32], strides = [1, 1]} : vector<4x32xf32> to vector<1x32xf32>
    %3 = vector.extract_strided_slice %0 {offsets = [2, 0], sizes = [1, 32], strides = [1, 1]} : vector<4x32xf32> to vector<1x32xf32>
    %4 = vector.extract_strided_slice %0 {offsets = [3, 0], sizes = [1, 1], strides = [1, 1]} : vector<4x32xf32> to vector<1x1xf32>
    %5 = vector.extract_strided_slice %0 {offsets = [3, 1], sizes = [1, 1], strides = [1, 1]} : vector<4x32xf32> to vector<1x1xf32>
    %6 = vector.extract_strided_slice %0 {offsets = [3, 2], sizes = [1, 1], strides = [1, 1]} : vector<4x32xf32> to vector<1x1xf32>
    %7 = vector.extract_strided_slice %0 {offsets = [3, 3], sizes = [1, 1], strides = [1, 1]} : vector<4x32xf32> to vector<1x1xf32>
    %c0_1 = arith.constant 0 : index
    %c0_2 = arith.constant 0 : index
    %8 = vector.load %arg1[%c0_1, %c0_2] : memref<128x64xf32, #tpu.memory_space<vmem>>, vector<128x64xf32>
    %c0_3 = arith.constant 0 : index
    %c0_4 = arith.constant 0 : index
    %9 = vector.load %arg2[%c0_3, %c0_4] : memref<64x32xf32, #tpu.memory_space<vmem>>, vector<64x32xf32>
    %cst = arith.constant dense<0.000000e+00> : vector<128x32xf32>
    %10 = tpu.matmul %8, %9, %cst {dimension_numbers = #tpu.dot_dimension_numbers<[1], [0], [0], [1], [0, 0, 1, 1], [], []>} : vector<128x64xf32>, vector<64x32xf32>, vector<128x32xf32> -> vector<128x32xf32>
    %11 = vector.broadcast %1 : vector<1x32xf32> to vector<128x32xf32>
    %12 = arith.addf %10, %11 : vector<128x32xf32>
    %cst_5 = arith.constant 0.000000e+00 : f32
    %13 = vector.broadcast %cst_5 : f32 to vector<128x32xf32>
    %14 = arith.maximumf %12, %13 : vector<128x32xf32>
    %15 = vector.broadcast %2 : vector<1x32xf32> to vector<128x32xf32>
    %16 = arith.mulf %14, %15 : vector<128x32xf32>
    %cst_6 = arith.constant dense<0.000000e+00> : vector<128xf32>
    %17 = vector.multi_reduction <add>, %16, %cst_6 [1] : vector<128x32xf32> to vector<128xf32>
    %18 = vector.shape_cast %17 : vector<128xf32> to vector<128x1xf32>
    %19 = vector.broadcast %4 : vector<1x1xf32> to vector<128x1xf32>
    %20 = arith.addf %18, %19 : vector<128x1xf32>
    %cst_7 = arith.constant 0.000000e+00 : f32
    %21 = vector.broadcast %cst_7 : f32 to vector<128x1xf32>
    %22 = arith.maximumf %20, %21 : vector<128x1xf32>
    %23 = vector.broadcast %3 : vector<1x32xf32> to vector<128x32xf32>
    %24 = arith.mulf %14, %23 : vector<128x32xf32>
    %cst_8 = arith.constant dense<0.000000e+00> : vector<128xf32>
    %25 = vector.multi_reduction <add>, %24, %cst_8 [1] : vector<128x32xf32> to vector<128xf32>
    %26 = vector.shape_cast %25 : vector<128xf32> to vector<128x1xf32>
    %27 = vector.broadcast %4 : vector<1x1xf32> to vector<128x1xf32>
    %28 = arith.addf %26, %27 : vector<128x1xf32>
    %cst_9 = arith.constant 0.000000e+00 : f32
    %29 = vector.broadcast %cst_9 : f32 to vector<128x1xf32>
    %30 = arith.maximumf %28, %29 : vector<128x1xf32>
    %31 = vector.broadcast %5 : vector<1x1xf32> to vector<128x1xf32>
    %32 = arith.mulf %22, %31 : vector<128x1xf32>
    %33 = vector.broadcast %6 : vector<1x1xf32> to vector<128x1xf32>
    %34 = arith.mulf %30, %33 : vector<128x1xf32>
    %35 = arith.addf %32, %34 : vector<128x1xf32>
    %36 = vector.broadcast %7 : vector<1x1xf32> to vector<128x1xf32>
    %37 = arith.addf %35, %36 : vector<128x1xf32>
    %c0_10 = arith.constant 0 : index
    %c0_11 = arith.constant 0 : index
    %38 = vector.load %arg4[%c0_10, %c0_11] : memref<128x1xf32, #tpu.memory_space<vmem>>, vector<128x1xf32>
    tpu.vector_store %arg4[%c0_10, %c0_11], %37 {strides = array<i32>} : memref<128x1xf32, #tpu.memory_space<vmem>>, vector<128x1xf32>,
    return
  }
  func.func @transform_0(%arg0: i32) -> (i32, i32) {
    %c0_i32 = arith.constant 0 : i32
    %c0_i32_0 = arith.constant 0 : i32
    return %arg0, %c0_i32 : i32, i32
  }
  func.func @transform_1(%arg0: i32) -> (i32, i32) {
    %c0_i32 = arith.constant 0 : i32
    %c0_i32_0 = arith.constant 0 : i32
    %c0_i32_1 = arith.constant 0 : i32
    return %c0_i32, %c0_i32_0 : i32, i32
  }
  func.func @transform_2(%arg0: i32) -> (i32, i32) {
    %c0_i32 = arith.constant 0 : i32
    %c0_i32_0 = arith.constant 0 : i32
    %c0_i32_1 = arith.constant 0 : i32
    return %c0_i32, %c0_i32_0 : i32, i32
  }
  func.func @transform_3(%arg0: i32) -> (i32, i32) {
    %c0_i32 = arith.constant 0 : i32
    %c0_i32_0 = arith.constant 0 : i32
    return %arg0, %c0_i32 : i32, i32
  }
}

</mosaic_0001>

<llo_original>
// kernel: _lambda_.1
$region0: #{_lambda_.1}
  #allocation0 [shape = 'u32[]', space=smem, size = 0x4, offset = 0x4, fixed_abs, tag = 'smem constant byte address 0x4 - core index']
  #allocation1 [shape = 'u32[72,128]{1,0:T(1,128)}', space=vmem, size = 0x9000, scoped, tag = 'internal scratch']
  %s0 = inlined_call_operand.vmem [shape: f32[256,64], index: 0, kind: input, shape index: {}]
  %s1 = inlined_call_operand.vmem [shape: f32[64,32], index: 1, kind: input, shape index: {}]
  %s2 = inlined_call_operand.vmem [shape: f32[4,32], index: 2, kind: input, shape index: {}]
  %s3 = inlined_call_operand.vmem [shape: f32[256,1], index: 3, kind: output, shape index: {}]
  %s4 = sld [smem:[#allocation0]]
  $region45: #{_lambda_.1} parent=0
    _
  %s6 = ssub.s32 1, %s4
  %s7 = scalar_select 0, %s6, %s4
  loop: start=0, step=1, limit=4
  $region2: #{_lambda_.1} parent=0 // loop_pre_header
    _
  $region3: #{_lambda_.1} parent=0 // loop_header
    %s9 = sphi 0, %s13
    %p10 = scmp.ge.s32.totalorder %s9, 4
    %s19 = sphi 0, %s21
    %s22 = sphi 0, %s19
    %s23 = sphi 0, %s22
    %s39 = sphi 0, %s23
    %s43 = sphi 0, %s43
    %s45 = sphi 0, %s43
    %s46 = sphi 0, %s45
    %s60 = sphi 0, %s46
    %s64 = sphi 0, %s64
    %s66 = sphi 0, %s64
    %s67 = sphi 0, %s66
    %s81 = sphi 0, %s67
    %s87 = sphi 0, %s89
    %s90 = sphi 0, %s87
    %s91 = sphi 0, %s90
    %s107 = sphi 0, %s91
  $region4: #{_lambda_.1} parent=0 // loop_header_branch
    %12 = sbr.rel (%p10) target = $region8
  $region5: #{_lambda_.1} parent=0 // loop_body
    %s14 = ssub.s32 %s9, 1
    %s15 = ssub.s32 %s9, 2
    %s16 = sadd.s32 %s9, 1
    %s17 = ssub.s32 %s9, %s16
    %p18 = scmp.eq.s32.totalorder %s17, 0
    %s20 = sadd.s32 %s19, 1
    %s21 = scalar_select %p18, %s19, %s20
    %p24 = pneg %p18
    %p25 = scmp.eq.s32.totalorder %s9, 1
    %p26 = por %p24, %p25
    %p27 = scmp.ne.s32.totalorder %s19, %s22
    %p28 = scmp.eq.s32.totalorder %s9, 0
    %p29 = por %p27, %p28
    %p30 = scmp.ne.s32.totalorder %s19, %s22
    %p31 = scmp.eq.s32.totalorder %s14, 1
    %p32 = por %p30, %p31
    %p33 = scmp.ne.s32.totalorder %s22, %s23
    %p34 = scmp.eq.s32.totalorder %s14, 0
    %p35 = por %p33, %p34
    %p36 = scmp.ne.s32.totalorder %s22, %s23
    %p37 = scmp.eq.s32.totalorder %s15, 1
    %p38 = por %p36, %p37
    %p40 = scmp.ne.s32.totalorder %s23, %s39
    %p41 = scmp.eq.s32.totalorder %s15, 0
    %p42 = por %p40, %p41
    %s44 = sadd.s32 %s43, 1
    %p47 = scmp.eq.s32.totalorder %s9, 1
    %p48 = scmp.ne.s32.totalorder %s43, %s45
    %p49 = scmp.eq.s32.totalorder %s9, 0
    %p50 = por %p48, %p49
    %p51 = scmp.ne.s32.totalorder %s43, %s45
    %p52 = scmp.eq.s32.totalorder %s14, 1
    %p53 = por %p51, %p52
    %p54 = scmp.ne.s32.totalorder %s45, %s46
    %p55 = scmp.eq.s32.totalorder %s14, 0
    %p56 = por %p54, %p55
    %p57 = scmp.ne.s32.totalorder %s45, %s46
    %p58 = scmp.eq.s32.totalorder %s15, 1
    %p59 = por %p57, %p58
    %p61 = scmp.ne.s32.totalorder %s46, %s60
    %p62 = scmp.eq.s32.totalorder %s15, 0
    %p63 = por %p61, %p62
    %s65 = sadd.s32 %s64, 1
    %p68 = scmp.eq.s32.totalorder %s9, 1
    %p69 = scmp.ne.s32.totalorder %s64, %s66
    %p70 = scmp.eq.s32.totalorder %s9, 0
    %p71 = por %p69, %p70
    %p72 = scmp.ne.s32.totalorder %s64, %s66
    %p73 = scmp.eq.s32.totalorder %s14, 1
    %p74 = por %p72, %p73
    %p75 = scmp.ne.s32.totalorder %s66, %s67
    %p76 = scmp.eq.s32.totalorder %s14, 0
    %p77 = por %p75, %p76
    %p78 = scmp.ne.s32.totalorder %s66, %s67
    %p79 = scmp.eq.s32.totalorder %s15, 1
    %p80 = por %p78, %p79
    %p82 = scmp.ne.s32.totalorder %s67, %s81
    %p83 = scmp.eq.s32.totalorder %s15, 0
    %p84 = por %p82, %p83
    %s85 = ssub.s32 %s9, %s16
    %p86 = scmp.eq.s32.totalorder %s85, 0
    %s88 = sadd.s32 %s87, 1
    %s89 = scalar_select %p86, %s87, %s88
    %p92 = pneg %p86
    %p93 = scmp.eq.s32.totalorder %s9, 1
    %p94 = por %p92, %p93
    %p95 = scmp.ne.s32.totalorder %s87, %s90
    %p96 = scmp.eq.s32.totalorder %s9, 0
    %p97 = por %p95, %p96
    %p98 = scmp.ne.s32.totalorder %s87, %s90
    %p99 = scmp.eq.s32.totalorder %s14, 1
    %p100 = por %p98, %p99
    %p101 = scmp.ne.s32.totalorder %s90, %s91
    %p102 = scmp.eq.s32.totalorder %s14, 0
    %p103 = por %p101, %p102
    %p104 = scmp.ne.s32.totalorder %s90, %s91
    %p105 = scmp.eq.s32.totalorder %s15, 1
    %p106 = por %p104, %p105
    %p108 = scmp.ne.s32.totalorder %s91, %s107
    %p109 = scmp.eq.s32.totalorder %s15, 0
    %p110 = por %p108, %p109
    %p111 = scmp.le.s32.totalorder 1, %s9
    %p112 = scmp.lt.s32.totalorder %s9, 3
    %p113 = pnand %p111, %p112
    %p114 = pneg %p113
    // Predicated region
    $region9: #{_lambda_.1} parent=5 // pred_check
      _
    $region10: #{_lambda_.1} parent=5 // pred_check_branch
      %116 = sbr.rel (%p113) target = $region12
    $region11: #{_lambda_.1} parent=5 // pred_region
      %s117 = ssub.s32 %s9, 1
      // Predicated region
      $region13: #{_lambda_.1} parent=11 // pred_check
        %p118 = pneg %p56
      $region14: #{_lambda_.1} parent=11 // pred_check_branch
        %120 = sbr.rel (%p118) target = $region16
      $region15: #{_lambda_.1} parent=11 // pred_region
        _
      $region16: #{_lambda_.1} parent=11 // pred_fallthru
        _
      // Predicated region
      $region17: #{_lambda_.1} parent=11 // pred_check
        %p121 = pneg %p77
      $region18: #{_lambda_.1} parent=11 // pred_check_branch
        %123 = sbr.rel (%p121) target = $region20
      $region19: #{_lambda_.1} parent=11 // pred_region
        _
      $region20: #{_lambda_.1} parent=11 // pred_fallthru
        _
    $region12: #{_lambda_.1} parent=5 // pred_fallthru
      _
    %p124 = scmp.lt.s32.totalorder %s9, 2
    // Predicated region
    $region21: #{_lambda_.1} parent=5 // pred_check
      %p125 = pneg %p124
    $region22: #{_lambda_.1} parent=5 // pred_check_branch
      %127 = sbr.rel (%p125) target = $region24
    $region23: #{_lambda_.1} parent=5 // pred_region
      // Predicated region
      $region25: #{_lambda_.1} parent=23 // pred_check
        %p128 = pneg %p29
      $region26: #{_lambda_.1} parent=23 // pred_check_branch
        %130 = sbr.rel (%p128) target = $region28
      $region27: #{_lambda_.1} parent=23 // pred_region
        %s131 = smul.u32 16, %s9
        %p132 = scmp.lt.s32.totalorder %s131, 31
        %s133 = scalar_select %p132, %s131, 31
        %s134 = smul.addr %s133, 8
        %s135 = scalar_lea.vmem %s0, %s134
        %s136 = smul.u32 16, %s9
      $region28: #{_lambda_.1} parent=23 // pred_fallthru
        _
    $region24: #{_lambda_.1} parent=5 // pred_fallthru
      _
    %p137 = scmp.le.s32.totalorder 1, %s9
    %p138 = scmp.lt.s32.totalorder %s9, 3
    %p139 = pnand %p137, %p138
    %p140 = pneg %p139
    // Predicated region
    $region29: #{_lambda_.1} parent=5 // pred_check
      _
    $region30: #{_lambda_.1} parent=5 // pred_check_branch
      %142 = sbr.rel (%p139) target = $region32
    $region31: #{_lambda_.1} parent=5 // pred_region
      %s143 = ssub.s32 %s9, 1
      %s144 = smul.u32 16, %s14
      %p145 = scmp.lt.s32.totalorder %s144, 31
      %s146 = scalar_select %p145, %s144, 31
      %s147 = smul.addr %s146, 8
      %s148 = scalar_lea.vmem %s0, %s147
      %p149 = pneg %p35
      %p150 = pneg %p32
      %p151 = pneg %p56
      %p152 = pneg %p53
      %p153 = pneg %p77
      %p154 = pneg %p74
      %p155 = pneg %p103
      %p156 = pneg %p100
      %s157 = smul.u32 16, %s14
      %p158 = scmp.lt.s32.totalorder %s157, 31
      %s159 = scalar_select %p158, %s157, 31
      %s160 = smul.addr %s159, 8
      %s161 = scalar_lea.vmem %s3, %s160
      %s162 = smul.u32 16, %s14
      %p163 = scmp.lt.s32.totalorder %s162, 31
      %s164 = scalar_select %p163, %s162, 31
      %s165 = smul.addr %s164, 8
      %s166 = scalar_lea.vmem %s0, %s165
      %s167 = smul.u32 16, %s14
      %s168 = smul.u32 16, %s14
      %p169 = scmp.lt.s32.totalorder %s168, 31
      %s170 = scalar_select %p169, %s168, 31
      %s171 = smul.addr %s170, 8
      %s172 = scalar_lea.vmem %s3, %s171
      %s173 = smul.u32 16, %s14
      %v174 = vld [vmem:[%s2] sm:$0xf]
      %v175 = vld [vmem:[%s166] sm:$0xff]
      %v176 = vld [vmem:[%s166 + $0x8] sm:$0xff]
      %v177 = vld [vmem:[%s166 + $0x10] sm:$0xff]
      %v178 = vld [vmem:[%s166 + $0x18] sm:$0xff]
      %v179 = vld [vmem:[%s166 + $0x20] sm:$0xff]
      %v180 = vld [vmem:[%s166 + $0x28] sm:$0xff]
      %v181 = vld [vmem:[%s166 + $0x30] sm:$0xff]
      %v182 = vld [vmem:[%s166 + $0x38] sm:$0xff]
      %v183 = vld [vmem:[%s166 + $0x40] sm:$0xff]
      %v184 = vld [vmem:[%s166 + $0x48] sm:$0xff]
      %v185 = vld [vmem:[%s166 + $0x50] sm:$0xff]
      %v186 = vld [vmem:[%s166 + $0x58] sm:$0xff]
      %v187 = vld [vmem:[%s166 + $0x60] sm:$0xff]
      %v188 = vld [vmem:[%s166 + $0x68] sm:$0xff]
      %v189 = vld [vmem:[%s166 + $0x70] sm:$0xff]
      %v190 = vld [vmem:[%s166 + $0x78] sm:$0xff]
      %v191 = vld [vmem:[%s1] sm:$0xff]
      %v192 = vld [vmem:[%s1 + $0x8] sm:$0xff]
      %v193 = vld [vmem:[%s1 + $0x10] sm:$0xff]
      %v194 = vld [vmem:[%s1 + $0x18] sm:$0xff]
      %v195 = vld [vmem:[%s1 + $0x20] sm:$0xff]
      %v196 = vld [vmem:[%s1 + $0x28] sm:$0xff]
      %v197 = vld [vmem:[%s1 + $0x30] sm:$0xff]
      %v198 = vld [vmem:[%s1 + $0x38] sm:$0xff]
      %v199 = vperm.slane %v174, 0
      %vm200 = vcmask 523264
      %v202 = vsel %vm200, %v175, 0
      %v205 = vsel %vm200, %v176, 0
      %v208 = vsel %vm200, %v177, 0
      %v211 = vsel %vm200, %v178, 0
      %v214 = vsel %vm200, %v179, 0
      %v217 = vsel %vm200, %v180, 0
      %v220 = vsel %vm200, %v181, 0
      %v223 = vsel %vm200, %v182, 0
      %v226 = vsel %vm200, %v183, 0
      %v229 = vsel %vm200, %v184, 0
      %v232 = vsel %vm200, %v185, 0
      %v235 = vsel %vm200, %v186, 0
      %v238 = vsel %vm200, %v187, 0
      %v241 = vsel %vm200, %v188, 0
      %v244 = vsel %vm200, %v189, 0
      %v247 = vsel %vm200, %v190, 0
      %249 = vmatpush.msra.mxu0 0.0
      %250 = vmatpush.msra.mxu0 0.0
      %251 = vmatpush.msra.mxu0 0.0
      %252 = vmatpush.msra.mxu0 0.0
      %253 = vmatpush.msra.mxu0 0.0
      %254 = vmatpush.msra.mxu0 0.0
      %255 = vmatpush.msra.mxu0 0.0
      %256 = vmatpush.msra.mxu0 0.0
      %257 = vmatpush.msra.mxu0 %v198
      %258 = vmatpush.msra.mxu0 %v197
      %259 = vmatpush.msra.mxu0 %v196
      %260 = vmatpush.msra.mxu0 %v195
      %261 = vmatpush.msra.mxu0 %v194
      %262 = vmatpush.msra.mxu0 %v193
      %263 = vmatpush.msra.mxu0 %v192
      %264 = vmatpush.msra.mxu0 %v191
      %265 = vmatmul.f32.gmra.mxu0 %v202
      %v266 = vpop.f32.mrf.mxu0
      %v267 = vadd.f32 %v199, %v266
      %268 = vmatmul.f32.gmra.mxu0 %v205
      %v269 = vpop.f32.mrf.mxu0
      %v270 = vadd.f32 %v199, %v269
      %271 = vmatmul.f32.gmra.mxu0 %v208
      %v272 = vpop.f32.mrf.mxu0
      %v273 = vadd.f32 %v199, %v272
      %274 = vmatmul.f32.gmra.mxu0 %v211
      %v275 = vpop.f32.mrf.mxu0
      %v276 = vadd.f32 %v199, %v275
      %277 = vmatmul.f32.gmra.mxu0 %v214
      %v278 = vpop.f32.mrf.mxu0
      %v279 = vadd.f32 %v199, %v278
      %280 = vmatmul.f32.gmra.mxu0 %v217
      %v281 = vpop.f32.mrf.mxu0
      %v282 = vadd.f32 %v199, %v281
      %283 = vmatmul.f32.gmra.mxu0 %v220
      %v284 = vpop.f32.mrf.mxu0
      %v285 = vadd.f32 %v199, %v284
      %286 = vmatmul.f32.gmra.mxu0 %v223
      %v287 = vpop.f32.mrf.mxu0
      %v288 = vadd.f32 %v199, %v287
      %289 = vmatmul.f32.gmra.mxu0 %v226
      %v290 = vpop.f32.mrf.mxu0
      %v291 = vadd.f32 %v199, %v290
      %292 = vmatmul.f32.gmra.mxu0 %v229
      %v293 = vpop.f32.mrf.mxu0
      %v294 = vadd.f32 %v199, %v293
      %295 = vmatmul.f32.gmra.mxu0 %v232
      %v296 = vpop.f32.mrf.mxu0
      %v297 = vadd.f32 %v199, %v296
      %298 = vmatmul.f32.gmra.mxu0 %v235
      %v299 = vpop.f32.mrf.mxu0
      %v300 = vadd.f32 %v199, %v299
      %301 = vmatmul.f32.gmra.mxu0 %v238
      %v302 = vpop.f32.mrf.mxu0
      %v303 = vadd.f32 %v199, %v302
      %304 = vmatmul.f32.gmra.mxu0 %v241
      %v305 = vpop.f32.mrf.mxu0
      %v306 = vadd.f32 %v199, %v305
      %307 = vmatmul.f32.gmra.mxu0 %v244
      %v308 = vpop.f32.mrf.mxu0
      %v309 = vadd.f32 %v199, %v308
      %310 = vmatmul.f32.gmra.mxu0 %v247
      %v311 = vpop.f32.mrf.mxu0
      %v312 = vadd.f32 %v199, %v311
      %313 = vdwg.mxu0
      %v314 = vmax.f32 %v267, 0.0
      %v315 = vmax.f32 %v270, 0.0
      %v316 = vmax.f32 %v273, 0.0
      %v317 = vmax.f32 %v276, 0.0
      %v318 = vmax.f32 %v279, 0.0
      %v319 = vmax.f32 %v282, 0.0
      %v320 = vmax.f32 %v285, 0.0
      %v321 = vmax.f32 %v288, 0.0
      %v322 = vmax.f32 %v291, 0.0
      %v323 = vmax.f32 %v294, 0.0
      %v324 = vmax.f32 %v297, 0.0
      %v325 = vmax.f32 %v300, 0.0
      %v326 = vmax.f32 %v303, 0.0
      %v327 = vmax.f32 %v306, 0.0
      %v328 = vmax.f32 %v309, 0.0
      %v329 = vmax.f32 %v312, 0.0
      %v330 = vperm.slane %v174, 1
      %v331 = vmul.f32 %v314, %v330
      %v332 = vmul.f32 %v315, %v330
      %v333 = vmul.f32 %v316, %v330
      %v334 = vmul.f32 %v317, %v330
      %v335 = vmul.f32 %v318, %v330
      %v336 = vmul.f32 %v319, %v330
      %v337 = vmul.f32 %v320, %v330
      %v338 = vmul.f32 %v321, %v330
      %v339 = vmul.f32 %v322, %v330
      %v340 = vmul.f32 %v323, %v330
      %v341 = vmul.f32 %v324, %v330
      %v342 = vmul.f32 %v325, %v330
      %v343 = vmul.f32 %v326, %v330
      %v344 = vmul.f32 %v327, %v330
      %v345 = vmul.f32 %v328, %v330
      %v346 = vmul.f32 %v329, %v330
      %vm347 = vcmask 261120
      %v348 = vsel %vm347, %v331, 0.0
      %349 = vadd.xlane.f32.xlu0 %v348
      %v350 = vpop.xlane.xlu0 %349
      %v351 = vsel %vm347, %v332, 0.0
      %352 = vadd.xlane.f32.xlu0 %v351
      %v353 = vpop.xlane.xlu0 %352
      %v354 = vsel %vm347, %v333, 0.0
      %355 = vadd.xlane.f32.xlu0 %v354
      %v356 = vpop.xlane.xlu0 %355
      %v357 = vsel %vm347, %v334, 0.0
      %358 = vadd.xlane.f32.xlu0 %v357
      %v359 = vpop.xlane.xlu0 %358
      %v360 = vsel %vm347, %v335, 0.0
      %361 = vadd.xlane.f32.xlu0 %v360
      %v362 = vpop.xlane.xlu0 %361
      %v363 = vsel %vm347, %v336, 0.0
      %364 = vadd.xlane.f32.xlu0 %v363
      %v365 = vpop.xlane.xlu0 %364
      %v366 = vsel %vm347, %v337, 0.0
      %367 = vadd.xlane.f32.xlu0 %v366
      %v368 = vpop.xlane.xlu0 %367
      %v369 = vsel %vm347, %v338, 0.0
      %370 = vadd.xlane.f32.xlu0 %v369
      %v371 = vpop.xlane.xlu0 %370
      %v372 = vsel %vm347, %v339, 0.0
      %373 = vadd.xlane.f32.xlu0 %v372
      %v374 = vpop.xlane.xlu0 %373
      %v375 = vsel %vm347, %v340, 0.0
      %376 = vadd.xlane.f32.xlu0 %v375
      %v377 = vpop.xlane.xlu0 %376
      %v378 = vsel %vm347, %v341, 0.0
      %379 = vadd.xlane.f32.xlu0 %v378
      %v380 = vpop.xlane.xlu0 %379
      %v381 = vsel %vm347, %v342, 0.0
      %382 = vadd.xlane.f32.xlu0 %v381
      %v383 = vpop.xlane.xlu0 %382
      %v384 = vsel %vm347, %v343, 0.0
      %385 = vadd.xlane.f32.xlu0 %v384
      %v386 = vpop.xlane.xlu0 %385
      %v387 = vsel %vm347, %v344, 0.0
      %388 = vadd.xlane.f32.xlu0 %v387
      %v389 = vpop.xlane.xlu0 %388
      %v390 = vsel %vm347, %v345, 0.0
      %391 = vadd.xlane.f32.xlu0 %v390
      %v392 = vpop.xlane.xlu0 %391
      %v393 = vsel %vm347, %v346, 0.0
      %394 = vadd.xlane.f32.xlu0 %v393
      %v395 = vpop.xlane.xlu0 %394
      %v396 = vperm.slane %v174, 3
      %v397 = vadd.f32 %v350, %v396
      %v398 = vadd.f32 %v353, %v396
      %v399 = vadd.f32 %v356, %v396
      %v400 = vadd.f32 %v359, %v396
      %v401 = vadd.f32 %v362, %v396
      %v402 = vadd.f32 %v365, %v396
      %v403 = vadd.f32 %v368, %v396
      %v404 = vadd.f32 %v371, %v396
      %v405 = vadd.f32 %v374, %v396
      %v406 = vadd.f32 %v377, %v396
      %v407 = vadd.f32 %v380, %v396
      %v408 = vadd.f32 %v383, %v396
      %v409 = vadd.f32 %v386, %v396
      %v410 = vadd.f32 %v389, %v396
      %v411 = vadd.f32 %v392, %v396
      %v412 = vadd.f32 %v395, %v396
      %v413 = vmax.f32 %v397, 0.0
      %v414 = vmax.f32 %v398, 0.0
      %v415 = vmax.f32 %v399, 0.0
      %v416 = vmax.f32 %v400, 0.0
      %v417 = vmax.f32 %v401, 0.0
      %v418 = vmax.f32 %v402, 0.0
      %v419 = vmax.f32 %v403, 0.0
      %v420 = vmax.f32 %v404, 0.0
      %v421 = vmax.f32 %v405, 0.0
      %v422 = vmax.f32 %v406, 0.0
      %v423 = vmax.f32 %v407, 0.0
      %v424 = vmax.f32 %v408, 0.0
      %v425 = vmax.f32 %v409, 0.0
      %v426 = vmax.f32 %v410, 0.0
      %v427 = vmax.f32 %v411, 0.0
      %v428 = vmax.f32 %v412, 0.0
      %v429 = vperm.slane %v174, 2
      %v430 = vmul.f32 %v314, %v429
      %v431 = vmul.f32 %v315, %v429
      %v432 = vmul.f32 %v316, %v429
      %v433 = vmul.f32 %v317, %v429
      %v434 = vmul.f32 %v318, %v429
      %v435 = vmul.f32 %v319, %v429
      %v436 = vmul.f32 %v320, %v429
      %v437 = vmul.f32 %v321, %v429
      %v438 = vmul.f32 %v322, %v429
      %v439 = vmul.f32 %v323, %v429
      %v440 = vmul.f32 %v324, %v429
      %v441 = vmul.f32 %v325, %v429
      %v442 = vmul.f32 %v326, %v429
      %v443 = vmul.f32 %v327, %v429
      %v444 = vmul.f32 %v328, %v429
      %v445 = vmul.f32 %v329, %v429
      %v446 = vsel %vm347, %v430, 0.0
      %447 = vadd.xlane.f32.xlu0 %v446
      %v448 = vpop.xlane.xlu0 %447
      %v449 = vsel %vm347, %v431, 0.0
      %450 = vadd.xlane.f32.xlu0 %v449
      %v451 = vpop.xlane.xlu0 %450
      %v452 = vsel %vm347, %v432, 0.0
      %453 = vadd.xlane.f32.xlu0 %v452
      %v454 = vpop.xlane.xlu0 %453
      %v455 = vsel %vm347, %v433, 0.0
      %456 = vadd.xlane.f32.xlu0 %v455
      %v457 = vpop.xlane.xlu0 %456
      %v458 = vsel %vm347, %v434, 0.0
      %459 = vadd.xlane.f32.xlu0 %v458
      %v460 = vpop.xlane.xlu0 %459
      %v461 = vsel %vm347, %v435, 0.0
      %462 = vadd.xlane.f32.xlu0 %v461
      %v463 = vpop.xlane.xlu0 %462
      %v464 = vsel %vm347, %v436, 0.0
      %465 = vadd.xlane.f32.xlu0 %v464
      %v466 = vpop.xlane.xlu0 %465
      %v467 = vsel %vm347, %v437, 0.0
      %468 = vadd.xlane.f32.xlu0 %v467
      %v469 = vpop.xlane.xlu0 %468
      %v470 = vsel %vm347, %v438, 0.0
      %471 = vadd.xlane.f32.xlu0 %v470
      %v472 = vpop.xlane.xlu0 %471
      %v473 = vsel %vm347, %v439, 0.0
      %474 = vadd.xlane.f32.xlu0 %v473
      %v475 = vpop.xlane.xlu0 %474
      %v476 = vsel %vm347, %v440, 0.0
      %477 = vadd.xlane.f32.xlu0 %v476
      %v478 = vpop.xlane.xlu0 %477
      %v479 = vsel %vm347, %v441, 0.0
      %480 = vadd.xlane.f32.xlu0 %v479
      %v481 = vpop.xlane.xlu0 %480
      %v482 = vsel %vm347, %v442, 0.0
      %483 = vadd.xlane.f32.xlu0 %v482
      %v484 = vpop.xlane.xlu0 %483
      %v485 = vsel %vm347, %v443, 0.0
      %486 = vadd.xlane.f32.xlu0 %v485
      %v487 = vpop.xlane.xlu0 %486
      %v488 = vsel %vm347, %v444, 0.0
      %489 = vadd.xlane.f32.xlu0 %v488
      %v490 = vpop.xlane.xlu0 %489
      %v491 = vsel %vm347, %v445, 0.0
      %492 = vadd.xlane.f32.xlu0 %v491
      %v493 = vpop.xlane.xlu0 %492
      %v494 = vadd.f32 %v448, %v396
      %v495 = vadd.f32 %v451, %v396
      %v496 = vadd.f32 %v454, %v396
      %v497 = vadd.f32 %v457, %v396
      %v498 = vadd.f32 %v460, %v396
      %v499 = vadd.f32 %v463, %v396
      %v500 = vadd.f32 %v466, %v396
      %v501 = vadd.f32 %v469, %v396
      %v502 = vadd.f32 %v472, %v396
      %v503 = vadd.f32 %v475, %v396
      %v504 = vadd.f32 %v478, %v396
      %v505 = vadd.f32 %v481, %v396
      %v506 = vadd.f32 %v484, %v396
      %v507 = vadd.f32 %v487, %v396
      %v508 = vadd.f32 %v490, %v396
      %v509 = vadd.f32 %v493, %v396
      %v510 = vmax.f32 %v494, 0.0
      %v511 = vmax.f32 %v495, 0.0
      %v512 = vmax.f32 %v496, 0.0
      %v513 = vmax.f32 %v497, 0.0
      %v514 = vmax.f32 %v498, 0.0
      %v515 = vmax.f32 %v499, 0.0
      %v516 = vmax.f32 %v500, 0.0
      %v517 = vmax.f32 %v501, 0.0
      %v518 = vmax.f32 %v502, 0.0
      %v519 = vmax.f32 %v503, 0.0
      %v520 = vmax.f32 %v504, 0.0
      %v521 = vmax.f32 %v505, 0.0
      %v522 = vmax.f32 %v506, 0.0
      %v523 = vmax.f32 %v507, 0.0
      %v524 = vmax.f32 %v508, 0.0
      %v525 = vmax.f32 %v509, 0.0
      %527 = vrot.lane.b32.xlu0 %v396, 127
      %v528 = vpop.permute.xlu0 %527
      %v530 = vmul.f32 %v413, %v528
      %v531 = vmul.f32 %v414, %v528
      %v532 = vmul.f32 %v415, %v528
      %v533 = vmul.f32 %v416, %v528
      %v534 = vmul.f32 %v417, %v528
      %v535 = vmul.f32 %v418, %v528
      %v536 = vmul.f32 %v419, %v528
      %v537 = vmul.f32 %v420, %v528
      %v538 = vmul.f32 %v421, %v528
      %v539 = vmul.f32 %v422, %v528
      %v540 = vmul.f32 %v423, %v528
      %v541 = vmul.f32 %v424, %v528
      %v542 = vmul.f32 %v425, %v528
      %v543 = vmul.f32 %v426, %v528
      %v544 = vmul.f32 %v427, %v528
      %v545 = vmul.f32 %v428, %v528
      %546 = vrot.lane.b32.xlu0 %v396, 126
      %v547 = vpop.permute.xlu0 %546
      %v549 = vmul.f32 %v510, %v547
      %v550 = vmul.f32 %v511, %v547
      %v551 = vmul.f32 %v512, %v547
      %v552 = vmul.f32 %v513, %v547
      %v553 = vmul.f32 %v514, %v547
      %v554 = vmul.f32 %v515, %v547
      %v555 = vmul.f32 %v516, %v547
      %v556 = vmul.f32 %v517, %v547
      %v557 = vmul.f32 %v518, %v547
      %v558 = vmul.f32 %v519, %v547
      %v559 = vmul.f32 %v520, %v547
      %v560 = vmul.f32 %v521, %v547
      %v561 = vmul.f32 %v522, %v547
      %v562 = vmul.f32 %v523, %v547
      %v563 = vmul.f32 %v524, %v547
      %v564 = vmul.f32 %v525, %v547
      %v565 = vadd.f32 %v530, %v549
      %v566 = vadd.f32 %v531, %v550
      %v567 = vadd.f32 %v532, %v551
      %v568 = vadd.f32 %v533, %v552
      %v569 = vadd.f32 %v534, %v553
      %v570 = vadd.f32 %v535, %v554
      %v571 = vadd.f32 %v536, %v555
      %v572 = vadd.f32 %v537, %v556
      %v573 = vadd.f32 %v538, %v557
      %v574 = vadd.f32 %v539, %v558
      %v575 = vadd.f32 %v540, %v559
      %v576 = vadd.f32 %v541, %v560
      %v577 = vadd.f32 %v542, %v561
      %v578 = vadd.f32 %v543, %v562
      %v579 = vadd.f32 %v544, %v563
      %v580 = vadd.f32 %v545, %v564
      %581 = vrot.lane.b32.xlu0 %v396, 125
      %v582 = vpop.permute.xlu0 %581
      %v584 = vadd.f32 %v565, %v582
      %v585 = vadd.f32 %v566, %v582
      %v586 = vadd.f32 %v567, %v582
      %v587 = vadd.f32 %v568, %v582
      %v588 = vadd.f32 %v569, %v582
      %v589 = vadd.f32 %v570, %v582
      %v590 = vadd.f32 %v571, %v582
      %v591 = vadd.f32 %v572, %v582
      %v592 = vadd.f32 %v573, %v582
      %v593 = vadd.f32 %v574, %v582
      %v594 = vadd.f32 %v575, %v582
      %v595 = vadd.f32 %v576, %v582
      %v596 = vadd.f32 %v577, %v582
      %v597 = vadd.f32 %v578, %v582
      %v598 = vadd.f32 %v579, %v582
      %v599 = vadd.f32 %v580, %v582
      %vm600 = vcmask 7168
      %601 = vst.msk [vmem:[%s172] sm:$0xff] %vm600, %v584
      %602 = vst.msk [vmem:[%s172 + $0x8] sm:$0xff] %vm600, %v585
      %603 = vst.msk [vmem:[%s172 + $0x10] sm:$0xff] %vm600, %v586
      %604 = vst.msk [vmem:[%s172 + $0x18] sm:$0xff] %vm600, %v587
      %605 = vst.msk [vmem:[%s172 + $0x20] sm:$0xff] %vm600, %v588
      %606 = vst.msk [vmem:[%s172 + $0x28] sm:$0xff] %vm600, %v589
      %607 = vst.msk [vmem:[%s172 + $0x30] sm:$0xff] %vm600, %v590
      %608 = vst.msk [vmem:[%s172 + $0x38] sm:$0xff] %vm600, %v591
      %609 = vst.msk [vmem:[%s172 + $0x40] sm:$0xff] %vm600, %v592
      %610 = vst.msk [vmem:[%s172 + $0x48] sm:$0xff] %vm600, %v593
      %611 = vst.msk [vmem:[%s172 + $0x50] sm:$0xff] %vm600, %v594
      %612 = vst.msk [vmem:[%s172 + $0x58] sm:$0xff] %vm600, %v595
      %613 = vst.msk [vmem:[%s172 + $0x60] sm:$0xff] %vm600, %v596
      %614 = vst.msk [vmem:[%s172 + $0x68] sm:$0xff] %vm600, %v597
      %615 = vst.msk [vmem:[%s172 + $0x70] sm:$0xff] %vm600, %v598
      %616 = vst.msk [vmem:[%s172 + $0x78] sm:$0xff] %vm600, %v599
      %s617 = smul.u32 16, %s14
      %p618 = scmp.lt.s32.totalorder %s617, 31
      %s619 = scalar_select %p618, %s617, 31
      %s620 = smul.addr %s619, 8
      %s621 = scalar_lea.vmem %s3, %s620
      // Predicated region
      $region33: #{_lambda_.1} parent=31 // pred_check
        %p622 = pneg %p100
      $region34: #{_lambda_.1} parent=31 // pred_check_branch
        %624 = sbr.rel (%p622) target = $region36
      $region35: #{_lambda_.1} parent=31 // pred_region
        %s625 = smul.u32 16, %s14
      $region36: #{_lambda_.1} parent=31 // pred_fallthru
        _
    $region32: #{_lambda_.1} parent=5 // pred_fallthru
      _
    %p626 = scmp.le.s32.totalorder 2, %s9
    // Predicated region
    $region37: #{_lambda_.1} parent=5 // pred_check
      %p627 = pneg %p626
    $region38: #{_lambda_.1} parent=5 // pred_check_branch
      %629 = sbr.rel (%p627) target = $region40
    $region39: #{_lambda_.1} parent=5 // pred_region
      %s630 = ssub.s32 %s9, 2
      // Predicated region
      $region41: #{_lambda_.1} parent=39 // pred_check
        %p631 = pneg %p106
      $region42: #{_lambda_.1} parent=39 // pred_check_branch
        %633 = sbr.rel (%p631) target = $region44
      $region43: #{_lambda_.1} parent=39 // pred_region
        %s634 = smul.u32 16, %s15
        %p635 = scmp.lt.s32.totalorder %s634, 31
        %s636 = scalar_select %p635, %s634, 31
        %s637 = smul.addr %s636, 8
        %s638 = scalar_lea.vmem %s3, %s637
      $region44: #{_lambda_.1} parent=39 // pred_fallthru
        _
    $region40: #{_lambda_.1} parent=5 // pred_fallthru
      _
  $region6: #{_lambda_.1} parent=0 // loop_footer
    %s13 = sadd.s32 1, %s9
  $region7: #{_lambda_.1} parent=0 // loop_footer_branch
    %8 = sbr.rel target = $region3
  $region8: #{_lambda_.1} parent=0 // loop_exit
    _

</llo_original>
